<compile_context>
chip_gen: v5e
topology: v5e:2x2
jax: 0.10.0
libtpu: 0.0.40
codegen_flags: <defaults>
</compile_context>

<pallas_src>
import functools

import jax
import jax.numpy as jnp
import numpy as np
from jax.experimental import pallas as pl
from jax.experimental.pallas import tpu as pltpu

# ---------------- sizes (small, consistent with the module) ----------------
B = 2        # batch
S = 8        # source length (encoder_hiddens time axis)
D = 32       # embed_hdim == hdim == zdim (must be equal, see module analysis)
HDIM = D
ZDIM = D
SEQLEN = 6   # decoder steps

NLANE = 128  # == 4 * HDIM, one full lane group

# ---- packed parameter slab layout (8-aligned rows, 128 lanes) --------------
R_WF0 = 0                          # rows  0:64  -> W_fused = [W_ih^T ; W_hh^T]  (64, 128)
R_WF1 = ZDIM + HDIM                # 64
R_BF = R_WF1                       # row   64    -> b_fused = b_ih + b_hh        (1, 128)
R_WA0 = -(-(R_BF + 1) // 8) * 8    # 72
R_WA1 = R_WA0 + D                  # rows 72:104 -> [w_proj | w_mu^T | 0]        (32, 128)
R_IZ = -(-R_WA1 // 8) * 8          # row  104    -> init_z in lanes 0:HDIM
N_ROWS = -(-(R_IZ + 1) // 8) * 8   # 112


def controller_kernel(enc_ref, params_ref, out_ref):
    """Whole forward in one invocation; the T-step recurrence is unrolled."""
    enc = enc_ref[...]                                   # (B, S, D)
    Bsz, Src, Dd = enc.shape
    T = out_ref.shape[0]
    Hd = HDIM

    # ---- loop-invariant parameter views (one packed slab, static slices) ----
    w_fused = params_ref[R_WF0:R_WF1, :]                 # (Z+H, 4H) = (64, 128)
    b_fused = params_ref[R_BF:R_BF + 1, :]               # (1, 4H)
    w_attn = params_ref[R_WA0:R_WA1, :]                  # (D, 128): [w_proj | w_mu^T | 0]
    init_z = params_ref[R_IZ:R_IZ + 1, 0:Hd]             # (1, H)

    # ---- hoisted encoder contractions: one MXU matmul, off the serial path ----
    enc2 = enc.reshape(Bsz * Src, Dd)                                  # (B*S, D)
    E = jnp.dot(enc2, w_attn, preferred_element_type=jnp.float32)      # (B*S, 128)
    e_proj = E[:, 0:Hd].reshape(Bsz, Src, Hd)            # (B, S, H):  enc @ w_proj
    e_mu = E[:, Hd:2 * Hd].reshape(Bsz, Src, ZDIM)       # (B, S, Z):  enc @ w_mu^T

    lane_pad = jnp.zeros((Bsz, NLANE - ZDIM - Src), jnp.float32)       # hoisted

    # ---- initial state (zeros for h/c, broadcast init_z as first input) ----
    h = jnp.zeros((Bsz, HDIM), jnp.float32)
    c = jnp.zeros((Bsz, HDIM), jnp.float32)
    z = jnp.broadcast_to(init_z, (Bsz, ZDIM))

    # T is tiny and static -> fully unrolled straight-line code.
    for t in range(T):
        # ---- fused LSTMCell (PyTorch gate order i, f, g, o); the only
        #      per-step MXU push left on the critical path ----
        zh = jnp.concatenate([z, h], axis=1)                              # (B, Z+H)
        gates = (jnp.dot(zh, w_fused, preferred_element_type=jnp.float32)
                 + b_fused)                                               # (B, 4H)
        sig = jax.nn.sigmoid(gates)          # one full-tile EUP chain
        tah = jnp.tanh(gates)                # one full-tile EUP chain
        i_g = sig[:, 0 * Hd:1 * Hd]
        f_g = sig[:, 1 * Hd:2 * Hd]
        g_g = tah[:, 2 * Hd:3 * Hd]
        o_g = sig[:, 3 * Hd:4 * Hd]
        c = f_g * c + i_g * g_g
        h = o_g * jnp.tanh(c)

        # ---- Luong global attention: scores = h . (enc @ w_proj), hoisted ----
        scores = jnp.sum(e_proj * h[:, None, :], axis=2)                  # (B, S)
        scores = scores - jnp.max(scores, axis=1, keepdims=True)
        p = jnp.exp(scores)
        inv = pl.reciprocal(jnp.sum(p, axis=1, keepdims=True), approx=False)
        attn = p * inv                                                    # softmax over S

        # ---- mu = (attn-weighted context) @ w_mu^T, with enc @ w_mu^T hoisted ----
        mu = jnp.sum(attn[:, :, None] * e_mu, axis=1)                     # (B, Z)
        z = mu

        # ---- one lane-dense (B, 128) store per step; HBM writeback once ----
        out_ref[t] = jnp.concatenate([mu, attn, lane_pad], axis=1)


def pack_controller_params(w_ih, b_ih, w_hh, b_hh, w_proj, w_mu, init_z):
    """Build the (112, 128) parameter slab ONCE (outside the per-call path)."""
    w_fused = jnp.concatenate([w_ih.T, w_hh.T], axis=0)          # (Z+H, 4H)
    b_fused = (b_ih + b_hh).reshape(1, 4 * HDIM)                 # (1, 4H)
    w_attn = jnp.zeros((D, NLANE), jnp.float32)
    w_attn = w_attn.at[:, 0:HDIM].set(w_proj)                    # Eproj = enc @ w_proj
    w_attn = w_attn.at[:, HDIM:2 * HDIM].set(w_mu.T)             # Emu   = enc @ w_mu^T
    slab = jnp.zeros((N_ROWS, NLANE), jnp.float32)
    slab = slab.at[R_WF0:R_WF1, :].set(w_fused)
    slab = slab.at[R_BF, :].set(b_fused[0])
    slab = slab.at[R_WA0:R_WA1, :].set(w_attn)
    slab = slab.at[R_IZ, 0:HDIM].set(init_z)
    return slab


@functools.partial(jax.jit, static_argnums=2)
def controller_forward(encoder_hiddens, params_slab, seqlen):
    """encoder_hiddens: (B, S, D) f32. Returns (zouts (B,T,Z), attns (B,T,S))."""
    Bsz, Src, _ = encoder_hiddens.shape
    vmem = pl.BlockSpec(memory_space=pltpu.MemorySpace.VMEM)

    slab = pl.pallas_call(
        controller_kernel,
        out_shape=jax.ShapeDtypeStruct((seqlen, Bsz, NLANE), jnp.float32),
        in_specs=[vmem, vmem],
        out_specs=vmem,
    )(encoder_hiddens, params_slab)

    # Unpack the lane-dense slab with trivial XLA slices (back to (B, T, feat)).
    zouts = jnp.transpose(slab[:, :, 0:ZDIM], (1, 0, 2))
    attns = jnp.transpose(slab[:, :, ZDIM:ZDIM + Src], (1, 0, 2))
    return zouts, attns


# ---------------- pure-JAX reference (mirrors the PyTorch forward) ----------
def controller_ref(enc, init_z, w_ih, b_ih, w_hh, b_hh, w_proj, w_mu, seqlen):
    Bsz = enc.shape[0]
    h = jnp.zeros((Bsz, HDIM), jnp.float32)
    c = jnp.zeros((Bsz, HDIM), jnp.float32)
    z = jnp.broadcast_to(init_z[None, :], (Bsz, HDIM))
    zouts, attns = [], []
    for _ in range(seqlen):
        gates = z @ w_ih.T + b_ih + h @ w_hh.T + b_hh
        i, f, g, o = jnp.split(gates, 4, axis=1)
        c = jax.nn.sigmoid(f) * c + jax.nn.sigmoid(i) * jnp.tanh(g)
        h = jax.nn.sigmoid(o) * jnp.tanh(c)
        x = h @ w_proj.T
        attn = jax.nn.softmax((enc * x[:, None, :]).sum(2), axis=1)
        cxt = (attn[:, :, None] * enc).sum(1)
        mu = cxt @ w_mu.T
        zouts.append(mu)
        attns.append(attn)
        z = mu
    return jnp.stack(zouts, 1), jnp.stack(attns, 1)


if __name__ == "__main__":
    key = jax.random.PRNGKey(0)
    ks = jax.random.split(key, 8)

    # deterministic synthetic parameters (PyTorch shapes, normal(0, 0.1))
    w_ih   = 0.1 * jax.random.normal(ks[0], (4 * HDIM, ZDIM), jnp.float32)
    w_hh   = 0.1 * jax.random.normal(ks[1], (4 * HDIM, HDIM), jnp.float32)
    b_ih   = 0.1 * jax.random.normal(ks[2], (4 * HDIM,), jnp.float32)
    b_hh   = 0.1 * jax.random.normal(ks[3], (4 * HDIM,), jnp.float32)
    w_proj = 0.1 * jax.random.normal(ks[4], (HDIM, D), jnp.float32)    # attention input_proj
    w_mu   = 0.1 * jax.random.normal(ks[5], (ZDIM, HDIM), jnp.float32) # mu_out
    init_z = 0.1 * jax.random.normal(ks[6], (HDIM,), jnp.float32)

    encoder_hiddens = jax.random.normal(ks[7], (B, S, D), jnp.float32)

    # One-time parameter packing (per review: not on the per-call path).
    params_slab = pack_controller_params(w_ih, b_ih, w_hh, b_hh,
                                         w_proj, w_mu, init_z)
    jax.block_until_ready(params_slab)

    zouts, attns = controller_forward(encoder_hiddens, params_slab, SEQLEN)
    jax.block_until_ready((zouts, attns))

    zouts_ref, attns_ref = controller_ref(encoder_hiddens, init_z, w_ih, b_ih,
                                          w_hh, b_hh, w_proj, w_mu, SEQLEN)
    np.testing.assert_allclose(np.asarray(zouts), np.asarray(zouts_ref),
                               atol=1e-4, rtol=1e-4)
    np.testing.assert_allclose(np.asarray(attns), np.asarray(attns_ref),
                               atol=1e-4, rtol=1e-4)

    assert zouts.shape == (B, SEQLEN, ZDIM) and attns.shape == (B, SEQLEN, S)
    print("KERNEL_OK")
</pallas_src>

<mosaic_0001>
module attributes {stable_mosaic.version = 11 : i64} {
  func.func @controller_kernel(%arg0: memref<2x8x32xf32, #tpu.memory_space<vmem>>, %arg1: memref<112x128xf32, #tpu.memory_space<vmem>>, %arg2: memref<6x2x128xf32, #tpu.memory_space<vmem>>) attributes {dimension_semantics = [], scalar_prefetch = 0 : i64, scratch_operands = 0 : i64, tpu.core_type = #tpu.core_type<tc>} {
    %c0 = arith.constant 0 : index
    %c0_0 = arith.constant 0 : index
    %c0_1 = arith.constant 0 : index
    %0 = vector.load %arg0[%c0, %c0_0, %c0_1] : memref<2x8x32xf32, #tpu.memory_space<vmem>>, vector<2x8x32xf32>
    %c0_2 = arith.constant 0 : index
    %c0_3 = arith.constant 0 : index
    %1 = vector.load %arg1[%c0_2, %c0_3] : memref<112x128xf32, #tpu.memory_space<vmem>>, vector<64x128xf32>
    %c64 = arith.constant 64 : index
    %c0_4 = arith.constant 0 : index
    %2 = vector.load %arg1[%c64, %c0_4] : memref<112x128xf32, #tpu.memory_space<vmem>>, vector<1x128xf32>
    %c72 = arith.constant 72 : index
    %c0_5 = arith.constant 0 : index
    %3 = vector.load %arg1[%c72, %c0_5] : memref<112x128xf32, #tpu.memory_space<vmem>>, vector<32x128xf32>
    %c104 = arith.constant 104 : index
    %c0_6 = arith.constant 0 : index
    %4 = vector.load %arg1[%c104, %c0_6] : memref<112x128xf32, #tpu.memory_space<vmem>>, vector<1x32xf32>
    %5 = vector.shape_cast %0 : vector<2x8x32xf32> to vector<16x32xf32>
    %cst = arith.constant dense<0.000000e+00> : vector<16x128xf32>
    %6 = tpu.matmul %5, %3, %cst {dimension_numbers = #tpu.dot_dimension_numbers<[1], [0], [0], [1], [0, 0, 1, 1], [], []>} : vector<16x32xf32>, vector<32x128xf32>, vector<16x128xf32> -> vector<16x128xf32>
    %7 = vector.extract_strided_slice %6 {offsets = [0, 0], sizes = [16, 32], strides = [1, 1]} : vector<16x128xf32> to vector<16x32xf32>
    %8 = vector.shape_cast %7 : vector<16x32xf32> to vector<2x8x32xf32>
    %9 = vector.extract_strided_slice %6 {offsets = [0, 32], sizes = [16, 32], strides = [1, 1]} : vector<16x128xf32> to vector<16x32xf32>
    %10 = vector.shape_cast %9 : vector<16x32xf32> to vector<2x8x32xf32>
    %cst_7 = arith.constant 0.000000e+00 : f32
    %11 = vector.broadcast %cst_7 : f32 to vector<2x88xf32>
    %cst_8 = arith.constant 0.000000e+00 : f32
    %12 = vector.broadcast %cst_8 : f32 to vector<2x32xf32>
    %cst_9 = arith.constant 0.000000e+00 : f32
    %13 = vector.broadcast %cst_9 : f32 to vector<2x32xf32>
    %14 = vector.shape_cast %4 : vector<1x32xf32> to vector<1x32xf32>
    %15 = vector.broadcast %14 : vector<1x32xf32> to vector<2x32xf32>
    %16 = tpu.concatenate %15, %12 in 1 : vector<2x32xf32>, vector<2x32xf32> -> vector<2x64xf32>
    %cst_10 = arith.constant dense<0.000000e+00> : vector<2x128xf32>
    %17 = tpu.matmul %16, %1, %cst_10 {dimension_numbers = #tpu.dot_dimension_numbers<[1], [0], [0], [1], [0, 0, 1, 1], [], []>} : vector<2x64xf32>, vector<64x128xf32>, vector<2x128xf32> -> vector<2x128xf32>
    %18 = vector.broadcast %2 : vector<1x128xf32> to vector<2x128xf32>
    %19 = arith.addf %17, %18 : vector<2x128xf32>
    %20 = arith.negf %19 : vector<2x128xf32>
    %21 = math.exp %20 : vector<2x128xf32>
    %cst_11 = arith.constant 1.000000e+00 : f32
    %22 = vector.broadcast %cst_11 : f32 to vector<2x128xf32>
    %23 = arith.addf %22, %21 : vector<2x128xf32>
    %24 = arith.divf %22, %23 : vector<2x128xf32>
    %25 = math.tanh %19 : vector<2x128xf32>
    %26 = vector.extract_strided_slice %24 {offsets = [0, 0], sizes = [2, 32], strides = [1, 1]} : vector<2x128xf32> to vector<2x32xf32>
    %27 = vector.extract_strided_slice %24 {offsets = [0, 32], sizes = [2, 32], strides = [1, 1]} : vector<2x128xf32> to vector<2x32xf32>
    %28 = vector.extract_strided_slice %25 {offsets = [0, 64], sizes = [2, 32], strides = [1, 1]} : vector<2x128xf32> to vector<2x32xf32>
    %29 = vector.extract_strided_slice %24 {offsets = [0, 96], sizes = [2, 32], strides = [1, 1]} : vector<2x128xf32> to vector<2x32xf32>
    %30 = arith.mulf %27, %13 : vector<2x32xf32>
    %31 = arith.mulf %26, %28 : vector<2x32xf32>
    %32 = arith.addf %30, %31 : vector<2x32xf32>
    %33 = math.tanh %32 : vector<2x32xf32>
    %34 = arith.mulf %29, %33 : vector<2x32xf32>
    %35 = vector.shape_cast %34 : vector<2x32xf32> to vector<2x1x32xf32>
    %36 = vector.broadcast %35 : vector<2x1x32xf32> to vector<2x8x32xf32>
    %37 = arith.mulf %8, %36 : vector<2x8x32xf32>
    %cst_12 = arith.constant dense<0.000000e+00> : vector<2x8xf32>
    %38 = vector.multi_reduction <add>, %37, %cst_12 [2] : vector<2x8x32xf32> to vector<2x8xf32>
    %cst_13 = arith.constant dense<0xFF800000> : vector<2xf32>
    %39 = vector.multi_reduction <maximumf>, %38, %cst_13 [1] : vector<2x8xf32> to vector<2xf32>
    %40 = vector.shape_cast %39 : vector<2xf32> to vector<2x1xf32>
    %41 = vector.broadcast %40 : vector<2x1xf32> to vector<2x8xf32>
    %42 = arith.subf %38, %41 : vector<2x8xf32>
    %43 = math.exp %42 : vector<2x8xf32>
    %cst_14 = arith.constant dense<0.000000e+00> : vector<2xf32>
    %44 = vector.multi_reduction <add>, %43, %cst_14 [1] : vector<2x8xf32> to vector<2xf32>
    %45 = vector.shape_cast %44 : vector<2xf32> to vector<2x1xf32>
    %46 = tpu.reciprocal %45 : vector<2x1xf32> -> vector<2x1xf32>
    %47 = vector.broadcast %46 : vector<2x1xf32> to vector<2x8xf32>
    %48 = arith.mulf %43, %47 : vector<2x8xf32>
    %49 = vector.shape_cast %48 : vector<2x8xf32> to vector<2x8x1xf32>
    %50 = vector.broadcast %49 : vector<2x8x1xf32> to vector<2x8x32xf32>
    %51 = arith.mulf %50, %10 : vector<2x8x32xf32>
    %cst_15 = arith.constant dense<0.000000e+00> : vector<2x32xf32>
    %52 = vector.multi_reduction <add>, %51, %cst_15 [1] : vector<2x8x32xf32> to vector<2x32xf32>
    %53 = tpu.concatenate %52, %48, %11 in 1 : vector<2x32xf32>, vector<2x8xf32>, vector<2x88xf32> -> vector<2x128xf32>
    %c0_16 = arith.constant 0 : index
    %c0_17 = arith.constant 0 : index
    %c0_18 = arith.constant 0 : index
    %54 = vector.load %arg2[%c0_16, %c0_17, %c0_18] : memref<6x2x128xf32, #tpu.memory_space<vmem>>, vector<1x2x128xf32>
    %55 = vector.shape_cast %54 : vector<1x2x128xf32> to vector<2x128xf32>
    %56 = vector.shape_cast %53 : vector<2x128xf32> to vector<1x2x128xf32>
    tpu.vector_store %arg2[%c0_16, %c0_17, %c0_18], %56 {strides = array<i32>} : memref<6x2x128xf32, #tpu.memory_space<vmem>>, vector<1x2x128xf32>,
    %57 = tpu.concatenate %52, %34 in 1 : vector<2x32xf32>, vector<2x32xf32> -> vector<2x64xf32>
    %cst_19 = arith.constant dense<0.000000e+00> : vector<2x128xf32>
    %58 = tpu.matmul %57, %1, %cst_19 {dimension_numbers = #tpu.dot_dimension_numbers<[1], [0], [0], [1], [0, 0, 1, 1], [], []>} : vector<2x64xf32>, vector<64x128xf32>, vector<2x128xf32> -> vector<2x128xf32>
    %59 = vector.broadcast %2 : vector<1x128xf32> to vector<2x128xf32>
    %60 = arith.addf %58, %59 : vector<2x128xf32>
    %61 = arith.negf %60 : vector<2x128xf32>
    %62 = math.exp %61 : vector<2x128xf32>
    %cst_20 = arith.constant 1.000000e+00 : f32
    %63 = vector.broadcast %cst_20 : f32 to vector<2x128xf32>
    %64 = arith.addf %63, %62 : vector<2x128xf32>
    %65 = arith.divf %63, %64 : vector<2x128xf32>
    %66 = math.tanh %60 : vector<2x128xf32>
    %67 = vector.extract_strided_slice %65 {offsets = [0, 0], sizes = [2, 32], strides = [1, 1]} : vector<2x128xf32> to vector<2x32xf32>
    %68 = vector.extract_strided_slice %65 {offsets = [0, 32], sizes = [2, 32], strides = [1, 1]} : vector<2x128xf32> to vector<2x32xf32>
    %69 = vector.extract_strided_slice %66 {offsets = [0, 64], sizes = [2, 32], strides = [1, 1]} : vector<2x128xf32> to vector<2x32xf32>
    %70 = vector.extract_strided_slice %65 {offsets = [0, 96], sizes = [2, 32], strides = [1, 1]} : vector<2x128xf32> to vector<2x32xf32>
    %71 = arith.mulf %68, %32 : vector<2x32xf32>
    %72 = arith.mulf %67, %69 : vector<2x32xf32>
    %73 = arith.addf %71, %72 : vector<2x32xf32>
    %74 = math.tanh %73 : vector<2x32xf32>
    %75 = arith.mulf %70, %74 : vector<2x32xf32>
    %76 = vector.shape_cast %75 : vector<2x32xf32> to vector<2x1x32xf32>
    %77 = vector.broadcast %76 : vector<2x1x32xf32> to vector<2x8x32xf32>
    %78 = arith.mulf %8, %77 : vector<2x8x32xf32>
    %cst_21 = arith.constant dense<0.000000e+00> : vector<2x8xf32>
    %79 = vector.multi_reduction <add>, %78, %cst_21 [2] : vector<2x8x32xf32> to vector<2x8xf32>
    %cst_22 = arith.constant dense<0xFF800000> : vector<2xf32>
    %80 = vector.multi_reduction <maximumf>, %79, %cst_22 [1] : vector<2x8xf32> to vector<2xf32>
    %81 = vector.shape_cast %80 : vector<2xf32> to vector<2x1xf32>
    %82 = vector.broadcast %81 : vector<2x1xf32> to vector<2x8xf32>
    %83 = arith.subf %79, %82 : vector<2x8xf32>
    %84 = math.exp %83 : vector<2x8xf32>
    %cst_23 = arith.constant dense<0.000000e+00> : vector<2xf32>
    %85 = vector.multi_reduction <add>, %84, %cst_23 [1] : vector<2x8xf32> to vector<2xf32>
    %86 = vector.shape_cast %85 : vector<2xf32> to vector<2x1xf32>
    %87 = tpu.reciprocal %86 : vector<2x1xf32> -> vector<2x1xf32>
    %88 = vector.broadcast %87 : vector<2x1xf32> to vector<2x8xf32>
    %89 = arith.mulf %84, %88 : vector<2x8xf32>
    %90 = vector.shape_cast %89 : vector<2x8xf32> to vector<2x8x1xf32>
    %91 = vector.broadcast %90 : vector<2x8x1xf32> to vector<2x8x32xf32>
    %92 = arith.mulf %91, %10 : vector<2x8x32xf32>
    %cst_24 = arith.constant dense<0.000000e+00> : vector<2x32xf32>
    %93 = vector.multi_reduction <add>, %92, %cst_24 [1] : vector<2x8x32xf32> to vector<2x32xf32>
    %94 = tpu.concatenate %93, %89, %11 in 1 : vector<2x32xf32>, vector<2x8xf32>, vector<2x88xf32> -> vector<2x128xf32>
    %c1 = arith.constant 1 : index
    %c0_25 = arith.constant 0 : index
    %c0_26 = arith.constant 0 : index
    %95 = vector.load %arg2[%c1, %c0_25, %c0_26] : memref<6x2x128xf32, #tpu.memory_space<vmem>>, vector<1x2x128xf32>
    %96 = vector.shape_cast %95 : vector<1x2x128xf32> to vector<2x128xf32>
    %97 = vector.shape_cast %94 : vector<2x128xf32> to vector<1x2x128xf32>
    tpu.vector_store %arg2[%c1, %c0_25, %c0_26], %97 {strides = array<i32>} : memref<6x2x128xf32, #tpu.memory_space<vmem>>, vector<1x2x128xf32>,
    %98 = tpu.concatenate %93, %75 in 1 : vector<2x32xf32>, vector<2x32xf32> -> vector<2x64xf32>
    %cst_27 = arith.constant dense<0.000000e+00> : vector<2x128xf32>
    %99 = tpu.matmul %98, %1, %cst_27 {dimension_numbers = #tpu.dot_dimension_numbers<[1], [0], [0], [1], [0, 0, 1, 1], [], []>} : vector<2x64xf32>, vector<64x128xf32>, vector<2x128xf32> -> vector<2x128xf32>
    %100 = vector.broadcast %2 : vector<1x128xf32> to vector<2x128xf32>
    %101 = arith.addf %99, %100 : vector<2x128xf32>
    %102 = arith.negf %101 : vector<2x128xf32>
    %103 = math.exp %102 : vector<2x128xf32>
    %cst_28 = arith.constant 1.000000e+00 : f32
    %104 = vector.broadcast %cst_28 : f32 to vector<2x128xf32>
    %105 = arith.addf %104, %103 : vector<2x128xf32>
    %106 = arith.divf %104, %105 : vector<2x128xf32>
    %107 = math.tanh %101 : vector<2x128xf32>
    %108 = vector.extract_strided_slice %106 {offsets = [0, 0], sizes = [2, 32], strides = [1, 1]} : vector<2x128xf32> to vector<2x32xf32>
    %109 = vector.extract_strided_slice %106 {offsets = [0, 32], sizes = [2, 32], strides = [1, 1]} : vector<2x128xf32> to vector<2x32xf32>
    %110 = vector.extract_strided_slice %107 {offsets = [0, 64], sizes = [2, 32], strides = [1, 1]} : vector<2x128xf32> to vector<2x32xf32>
    %111 = vector.extract_strided_slice %106 {offsets = [0, 96], sizes = [2, 32], strides = [1, 1]} : vector<2x128xf32> to vector<2x32xf32>
    %112 = arith.mulf %109, %73 : vector<2x32xf32>
    %113 = arith.mulf %108, %110 : vector<2x32xf32>
    %114 = arith.addf %112, %113 : vector<2x32xf32>
    %115 = math.tanh %114 : vector<2x32xf32>
    %116 = arith.mulf %111, %115 : vector<2x32xf32>
    %117 = vector.shape_cast %116 : vector<2x32xf32> to vector<2x1x32xf32>
    %118 = vector.broadcast %117 : vector<2x1x32xf32> to vector<2x8x32xf32>
    %119 = arith.mulf %8, %118 : vector<2x8x32xf32>
    %cst_29 = arith.constant dense<0.000000e+00> : vector<2x8xf32>
    %120 = vector.multi_reduction <add>, %119, %cst_29 [2] : vector<2x8x32xf32> to vector<2x8xf32>
    %cst_30 = arith.constant dense<0xFF800000> : vector<2xf32>
    %121 = vector.multi_reduction <maximumf>, %120, %cst_30 [1] : vector<2x8xf32> to vector<2xf32>
    %122 = vector.shape_cast %121 : vector<2xf32> to vector<2x1xf32>
    %123 = vector.broadcast %122 : vector<2x1xf32> to vector<2x8xf32>
    %124 = arith.subf %120, %123 : vector<2x8xf32>
    %125 = math.exp %124 : vector<2x8xf32>
    %cst_31 = arith.constant dense<0.000000e+00> : vector<2xf32>
    %126 = vector.multi_reduction <add>, %125, %cst_31 [1] : vector<2x8xf32> to vector<2xf32>
    %127 = vector.shape_cast %126 : vector<2xf32> to vector<2x1xf32>
    %128 = tpu.reciprocal %127 : vector<2x1xf32> -> vector<2x1xf32>
    %129 = vector.broadcast %128 : vector<2x1xf32> to vector<2x8xf32>
    %130 = arith.mulf %125, %129 : vector<2x8xf32>
    %131 = vector.shape_cast %130 : vector<2x8xf32> to vector<2x8x1xf32>
    %132 = vector.broadcast %131 : vector<2x8x1xf32> to vector<2x8x32xf32>
    %133 = arith.mulf %132, %10 : vector<2x8x32xf32>
    %cst_32 = arith.constant dense<0.000000e+00> : vector<2x32xf32>
    %134 = vector.multi_reduction <add>, %133, %cst_32 [1] : vector<2x8x32xf32> to vector<2x32xf32>
    %135 = tpu.concatenate %134, %130, %11 in 1 : vector<2x32xf32>, vector<2x8xf32>, vector<2x88xf32> -> vector<2x128xf32>
    %c2 = arith.constant 2 : index
    %c0_33 = arith.constant 0 : index
    %c0_34 = arith.constant 0 : index
    %136 = vector.load %arg2[%c2, %c0_33, %c0_34] : memref<6x2x128xf32, #tpu.memory_space<vmem>>, vector<1x2x128xf32>
    %137 = vector.shape_cast %136 : vector<1x2x128xf32> to vector<2x128xf32>
    %138 = vector.shape_cast %135 : vector<2x128xf32> to vector<1x2x128xf32>
    tpu.vector_store %arg2[%c2, %c0_33, %c0_34], %138 {strides = array<i32>} : memref<6x2x128xf32, #tpu.memory_space<vmem>>, vector<1x2x128xf32>,
    %139 = tpu.concatenate %134, %116 in 1 : vector<2x32xf32>, vector<2x32xf32> -> vector<2x64xf32>
    %cst_35 = arith.constant dense<0.000000e+00> : vector<2x128xf32>
    %140 = tpu.matmul %139, %1, %cst_35 {dimension_numbers = #tpu.dot_dimension_numbers<[1], [0], [0], [1], [0, 0, 1, 1], [], []>} : vector<2x64xf32>, vector<64x128xf32>, vector<2x128xf32> -> vector<2x128xf32>
    %141 = vector.broadcast %2 : vector<1x128xf32> to vector<2x128xf32>
    %142 = arith.addf %140, %141 : vector<2x128xf32>
    %143 = arith.negf %142 : vector<2x128xf32>
    %144 = math.exp %143 : vector<2x128xf32>
    %cst_36 = arith.constant 1.000000e+00 : f32
    %145 = vector.broadcast %cst_36 : f32 to vector<2x128xf32>
    %146 = arith.addf %145, %144 : vector<2x128xf32>
    %147 = arith.divf %145, %146 : vector<2x128xf32>
    %148 = math.tanh %142 : vector<2x128xf32>
    %149 = vector.extract_strided_slice %147 {offsets = [0, 0], sizes = [2, 32], strides = [1, 1]} : vector<2x128xf32> to vector<2x32xf32>
    %150 = vector.extract_strided_slice %147 {offsets = [0, 32], sizes = [2, 32], strides = [1, 1]} : vector<2x128xf32> to vector<2x32xf32>
    %151 = vector.extract_strided_slice %148 {offsets = [0, 64], sizes = [2, 32], strides = [1, 1]} : vector<2x128xf32> to vector<2x32xf32>
    %152 = vector.extract_strided_slice %147 {offsets = [0, 96], sizes = [2, 32], strides = [1, 1]} : vector<2x128xf32> to vector<2x32xf32>
    %153 = arith.mulf %150, %114 : vector<2x32xf32>
    %154 = arith.mulf %149, %151 : vector<2x32xf32>
    %155 = arith.addf %153, %154 : vector<2x32xf32>
    %156 = math.tanh %155 : vector<2x32xf32>
    %157 = arith.mulf %152, %156 : vector<2x32xf32>
    %158 = vector.shape_cast %157 : vector<2x32xf32> to vector<2x1x32xf32>
    %159 = vector.broadcast %158 : vector<2x1x32xf32> to vector<2x8x32xf32>
    %160 = arith.mulf %8, %159 : vector<2x8x32xf32>
    %cst_37 = arith.constant dense<0.000000e+00> : vector<2x8xf32>
    %161 = vector.multi_reduction <add>, %160, %cst_37 [2] : vector<2x8x32xf32> to vector<2x8xf32>
    %cst_38 = arith.constant dense<0xFF800000> : vector<2xf32>
    %162 = vector.multi_reduction <maximumf>, %161, %cst_38 [1] : vector<2x8xf32> to vector<2xf32>
    %163 = vector.shape_cast %162 : vector<2xf32> to vector<2x1xf32>
    %164 = vector.broadcast %163 : vector<2x1xf32> to vector<2x8xf32>
    %165 = arith.subf %161, %164 : vector<2x8xf32>
    %166 = math.exp %165 : vector<2x8xf32>
    %cst_39 = arith.constant dense<0.000000e+00> : vector<2xf32>
    %167 = vector.multi_reduction <add>, %166, %cst_39 [1] : vector<2x8xf32> to vector<2xf32>
    %168 = vector.shape_cast %167 : vector<2xf32> to vector<2x1xf32>
    %169 = tpu.reciprocal %168 : vector<2x1xf32> -> vector<2x1xf32>
    %170 = vector.broadcast %169 : vector<2x1xf32> to vector<2x8xf32>
    %171 = arith.mulf %166, %170 : vector<2x8xf32>
    %172 = vector.shape_cast %171 : vector<2x8xf32> to vector<2x8x1xf32>
    %173 = vector.broadcast %172 : vector<2x8x1xf32> to vector<2x8x32xf32>
    %174 = arith.mulf %173, %10 : vector<2x8x32xf32>
    %cst_40 = arith.constant dense<0.000000e+00> : vector<2x32xf32>
    %175 = vector.multi_reduction <add>, %174, %cst_40 [1] : vector<2x8x32xf32> to vector<2x32xf32>
    %176 = tpu.concatenate %175, %171, %11 in 1 : vector<2x32xf32>, vector<2x8xf32>, vector<2x88xf32> -> vector<2x128xf32>
    %c3 = arith.constant 3 : index
    %c0_41 = arith.constant 0 : index
    %c0_42 = arith.constant 0 : index
    %177 = vector.load %arg2[%c3, %c0_41, %c0_42] : memref<6x2x128xf32, #tpu.memory_space<vmem>>, vector<1x2x128xf32>
    %178 = vector.shape_cast %177 : vector<1x2x128xf32> to vector<2x128xf32>
    %179 = vector.shape_cast %176 : vector<2x128xf32> to vector<1x2x128xf32>
    tpu.vector_store %arg2[%c3, %c0_41, %c0_42], %179 {strides = array<i32>} : memref<6x2x128xf32, #tpu.memory_space<vmem>>, vector<1x2x128xf32>,
    %180 = tpu.concatenate %175, %157 in 1 : vector<2x32xf32>, vector<2x32xf32> -> vector<2x64xf32>
    %cst_43 = arith.constant dense<0.000000e+00> : vector<2x128xf32>
    %181 = tpu.matmul %180, %1, %cst_43 {dimension_numbers = #tpu.dot_dimension_numbers<[1], [0], [0], [1], [0, 0, 1, 1], [], []>} : vector<2x64xf32>, vector<64x128xf32>, vector<2x128xf32> -> vector<2x128xf32>
    %182 = vector.broadcast %2 : vector<1x128xf32> to vector<2x128xf32>
    %183 = arith.addf %181, %182 : vector<2x128xf32>
    %184 = arith.negf %183 : vector<2x128xf32>
    %185 = math.exp %184 : vector<2x128xf32>
    %cst_44 = arith.constant 1.000000e+00 : f32
    %186 = vector.broadcast %cst_44 : f32 to vector<2x128xf32>
    %187 = arith.addf %186, %185 : vector<2x128xf32>
    %188 = arith.divf %186, %187 : vector<2x128xf32>
    %189 = math.tanh %183 : vector<2x128xf32>
    %190 = vector.extract_strided_slice %188 {offsets = [0, 0], sizes = [2, 32], strides = [1, 1]} : vector<2x128xf32> to vector<2x32xf32>
    %191 = vector.extract_strided_slice %188 {offsets = [0, 32], sizes = [2, 32], strides = [1, 1]} : vector<2x128xf32> to vector<2x32xf32>
    %192 = vector.extract_strided_slice %189 {offsets = [0, 64], sizes = [2, 32], strides = [1, 1]} : vector<2x128xf32> to vector<2x32xf32>
    %193 = vector.extract_strided_slice %188 {offsets = [0, 96], sizes = [2, 32], strides = [1, 1]} : vector<2x128xf32> to vector<2x32xf32>
    %194 = arith.mulf %191, %155 : vector<2x32xf32>
    %195 = arith.mulf %190, %192 : vector<2x32xf32>
    %196 = arith.addf %194, %195 : vector<2x32xf32>
    %197 = math.tanh %196 : vector<2x32xf32>
    %198 = arith.mulf %193, %197 : vector<2x32xf32>
    %199 = vector.shape_cast %198 : vector<2x32xf32> to vector<2x1x32xf32>
    %200 = vector.broadcast %199 : vector<2x1x32xf32> to vector<2x8x32xf32>
    %201 = arith.mulf %8, %200 : vector<2x8x32xf32>
    %cst_45 = arith.constant dense<0.000000e+00> : vector<2x8xf32>
    %202 = vector.multi_reduction <add>, %201, %cst_45 [2] : vector<2x8x32xf32> to vector<2x8xf32>
    %cst_46 = arith.constant dense<0xFF800000> : vector<2xf32>
    %203 = vector.multi_reduction <maximumf>, %202, %cst_46 [1] : vector<2x8xf32> to vector<2xf32>
    %204 = vector.shape_cast %203 : vector<2xf32> to vector<2x1xf32>
    %205 = vector.broadcast %204 : vector<2x1xf32> to vector<2x8xf32>
    %206 = arith.subf %202, %205 : vector<2x8xf32>
    %207 = math.exp %206 : vector<2x8xf32>
    %cst_47 = arith.constant dense<0.000000e+00> : vector<2xf32>
    %208 = vector.multi_reduction <add>, %207, %cst_47 [1] : vector<2x8xf32> to vector<2xf32>
    %209 = vector.shape_cast %208 : vector<2xf32> to vector<2x1xf32>
    %210 = tpu.reciprocal %209 : vector<2x1xf32> -> vector<2x1xf32>
    %211 = vector.broadcast %210 : vector<2x1xf32> to vector<2x8xf32>
    %212 = arith.mulf %207, %211 : vector<2x8xf32>
    %213 = vector.shape_cast %212 : vector<2x8xf32> to vector<2x8x1xf32>
    %214 = vector.broadcast %213 : vector<2x8x1xf32> to vector<2x8x32xf32>
    %215 = arith.mulf %214, %10 : vector<2x8x32xf32>
    %cst_48 = arith.constant dense<0.000000e+00> : vector<2x32xf32>
    %216 = vector.multi_reduction <add>, %215, %cst_48 [1] : vector<2x8x32xf32> to vector<2x32xf32>
    %217 = tpu.concatenate %216, %212, %11 in 1 : vector<2x32xf32>, vector<2x8xf32>, vector<2x88xf32> -> vector<2x128xf32>
    %c4 = arith.constant 4 : index
    %c0_49 = arith.constant 0 : index
    %c0_50 = arith.constant 0 : index
    %218 = vector.load %arg2[%c4, %c0_49, %c0_50] : memref<6x2x128xf32, #tpu.memory_space<vmem>>, vector<1x2x128xf32>
    %219 = vector.shape_cast %218 : vector<1x2x128xf32> to vector<2x128xf32>
    %220 = vector.shape_cast %217 : vector<2x128xf32> to vector<1x2x128xf32>
    tpu.vector_store %arg2[%c4, %c0_49, %c0_50], %220 {strides = array<i32>} : memref<6x2x128xf32, #tpu.memory_space<vmem>>, vector<1x2x128xf32>,
    %221 = tpu.concatenate %216, %198 in 1 : vector<2x32xf32>, vector<2x32xf32> -> vector<2x64xf32>
    %cst_51 = arith.constant dense<0.000000e+00> : vector<2x128xf32>
    %222 = tpu.matmul %221, %1, %cst_51 {dimension_numbers = #tpu.dot_dimension_numbers<[1], [0], [0], [1], [0, 0, 1, 1], [], []>} : vector<2x64xf32>, vector<64x128xf32>, vector<2x128xf32> -> vector<2x128xf32>
    %223 = vector.broadcast %2 : vector<1x128xf32> to vector<2x128xf32>
    %224 = arith.addf %222, %223 : vector<2x128xf32>
    %225 = arith.negf %224 : vector<2x128xf32>
    %226 = math.exp %225 : vector<2x128xf32>
    %cst_52 = arith.constant 1.000000e+00 : f32
    %227 = vector.broadcast %cst_52 : f32 to vector<2x128xf32>
    %228 = arith.addf %227, %226 : vector<2x128xf32>
    %229 = arith.divf %227, %228 : vector<2x128xf32>
    %230 = math.tanh %224 : vector<2x128xf32>
    %231 = vector.extract_strided_slice %229 {offsets = [0, 0], sizes = [2, 32], strides = [1, 1]} : vector<2x128xf32> to vector<2x32xf32>
    %232 = vector.extract_strided_slice %229 {offsets = [0, 32], sizes = [2, 32], strides = [1, 1]} : vector<2x128xf32> to vector<2x32xf32>
    %233 = vector.extract_strided_slice %230 {offsets = [0, 64], sizes = [2, 32], strides = [1, 1]} : vector<2x128xf32> to vector<2x32xf32>
    %234 = vector.extract_strided_slice %229 {offsets = [0, 96], sizes = [2, 32], strides = [1, 1]} : vector<2x128xf32> to vector<2x32xf32>
    %235 = arith.mulf %232, %196 : vector<2x32xf32>
    %236 = arith.mulf %231, %233 : vector<2x32xf32>
    %237 = arith.addf %235, %236 : vector<2x32xf32>
    %238 = math.tanh %237 : vector<2x32xf32>
    %239 = arith.mulf %234, %238 : vector<2x32xf32>
    %240 = vector.shape_cast %239 : vector<2x32xf32> to vector<2x1x32xf32>
    %241 = vector.broadcast %240 : vector<2x1x32xf32> to vector<2x8x32xf32>
    %242 = arith.mulf %8, %241 : vector<2x8x32xf32>
    %cst_53 = arith.constant dense<0.000000e+00> : vector<2x8xf32>
    %243 = vector.multi_reduction <add>, %242, %cst_53 [2] : vector<2x8x32xf32> to vector<2x8xf32>
    %cst_54 = arith.constant dense<0xFF800000> : vector<2xf32>
    %244 = vector.multi_reduction <maximumf>, %243, %cst_54 [1] : vector<2x8xf32> to vector<2xf32>
    %245 = vector.shape_cast %244 : vector<2xf32> to vector<2x1xf32>
    %246 = vector.broadcast %245 : vector<2x1xf32> to vector<2x8xf32>
    %247 = arith.subf %243, %246 : vector<2x8xf32>
    %248 = math.exp %247 : vector<2x8xf32>
    %cst_55 = arith.constant dense<0.000000e+00> : vector<2xf32>
    %249 = vector.multi_reduction <add>, %248, %cst_55 [1] : vector<2x8xf32> to vector<2xf32>
    %250 = vector.shape_cast %249 : vector<2xf32> to vector<2x1xf32>
    %251 = tpu.reciprocal %250 : vector<2x1xf32> -> vector<2x1xf32>
    %252 = vector.broadcast %251 : vector<2x1xf32> to vector<2x8xf32>
    %253 = arith.mulf %248, %252 : vector<2x8xf32>
    %254 = vector.shape_cast %253 : vector<2x8xf32> to vector<2x8x1xf32>
    %255 = vector.broadcast %254 : vector<2x8x1xf32> to vector<2x8x32xf32>
    %256 = arith.mulf %255, %10 : vector<2x8x32xf32>
    %cst_56 = arith.constant dense<0.000000e+00> : vector<2x32xf32>
    %257 = vector.multi_reduction <add>, %256, %cst_56 [1] : vector<2x8x32xf32> to vector<2x32xf32>
    %258 = tpu.concatenate %257, %253, %11 in 1 : vector<2x32xf32>, vector<2x8xf32>, vector<2x88xf32> -> vector<2x128xf32>
    %c5 = arith.constant 5 : index
    %c0_57 = arith.constant 0 : index
    %c0_58 = arith.constant 0 : index
    %259 = vector.load %arg2[%c5, %c0_57, %c0_58] : memref<6x2x128xf32, #tpu.memory_space<vmem>>, vector<1x2x128xf32>
    %260 = vector.shape_cast %259 : vector<1x2x128xf32> to vector<2x128xf32>
    %261 = vector.shape_cast %258 : vector<2x128xf32> to vector<1x2x128xf32>
    tpu.vector_store %arg2[%c5, %c0_57, %c0_58], %261 {strides = array<i32>} : memref<6x2x128xf32, #tpu.memory_space<vmem>>, vector<1x2x128xf32>,
    return
  }
}

</mosaic_0001>

<llo_original>
// kernel: controller_forward.1
$region0: #{controller_forward.1}
  #allocation0 [shape = 'u32[]', space=smem, size = 0x4, offset = 0x4, fixed_abs, tag = 'smem constant byte address 0x4 - core index']
  #allocation1 [shape = 'u32[72,128]{1,0:T(1,128)}', space=vmem, size = 0x9000, scoped, tag = 'internal scratch']
  %s0 = inlined_call_operand.hbm [shape: f32[2,8,32], index: 0, kind: input, shape index: {}]
  %s1 = inlined_call_operand.hbm [shape: f32[112,128], index: 1, kind: input, shape index: {}]
  %s2 = inlined_call_operand.vmem [shape: f32[6,2,128], index: 2, kind: output, shape index: {}]
  %s3 = sld [smem:[#allocation0]]
  $region26: #{controller_forward.1} parent=0
    _
  %s5 = ssub.s32 1, %s3
  %s6 = scalar_select 0, %s5, %s3
  $region1: #{controller_forward.1} parent=0
    #allocation2 [shape = 'u8[8192]{0}', space=vmem, size = 0x2000, scoped, tag = 'input window, operand 0, single buffered']
    #allocation3 [shape = 's32[1]{0}', space=sflag, size = 0x4, scoped, tag = 'scoped memory for controller_forward.1']
    #allocation4 [shape = 'u8[57344]{0}', space=vmem, size = 0xe000, scoped, tag = 'input window, operand 1, single buffered']
    #allocation5 [shape = 's32[1]{0}', space=sflag, size = 0x4, scoped, tag = 'scoped memory for controller_forward.1']
    %7 = vsyncpa [#allocation3], 0
    %8 = vsyncpa [#allocation5], 0
    // Predicated region
    $region2: #{controller_forward.1} parent=1 // pred_check
      _
    $region3: #{controller_forward.1} parent=1 // pred_check_branch
      %10 = sbr.rel (0) target = $region5
    $region4: #{controller_forward.1} parent=1 // pred_region
      %12 = vsyncadd [#allocation3], 0
      %s13 = sshll.u32 %s0, 4
      %s14 = int_to_ptr.hbm [resolvable:$true] %s13
      %s15 = sshll.u32 [#allocation2], 4
      %s16 = int_to_ptr.vmem [resolvable:$true] %s15
      %21 = dma.hbm_to_vmem [thread:$0]  %s14, 256, %s16, [#allocation3], 128, 128, 8
    $region5: #{controller_forward.1} parent=1 // pred_fallthru
      _
    // Predicated region
    $region6: #{controller_forward.1} parent=1 // pred_check
      _
    $region7: #{controller_forward.1} parent=1 // pred_check_branch
      %23 = sbr.rel (0) target = $region9
    $region8: #{controller_forward.1} parent=1 // pred_region
      %25 = vsyncadd [#allocation5], 0
      %s26 = sshll.u32 %s1, 4
      %s27 = int_to_ptr.hbm [resolvable:$true] %s26
      %s28 = sshll.u32 [#allocation4], 4
      %s29 = int_to_ptr.vmem [resolvable:$true] %s28
      %34 = dma.hbm_to_vmem [thread:$0]  %s27, 1792, %s29, [#allocation5], 128, 128, 8
    $region9: #{controller_forward.1} parent=1 // pred_fallthru
      _
    // Predicated region
    $region10: #{controller_forward.1} parent=1 // pred_check
      _
    $region11: #{controller_forward.1} parent=1 // pred_check_branch
      %36 = sbr.rel (0) target = $region13
    $region12: #{controller_forward.1} parent=1 // pred_region
      %38 = dma.done [#allocation3], 256
    $region13: #{controller_forward.1} parent=1 // pred_fallthru
      _
    // Predicated region
    $region14: #{controller_forward.1} parent=1 // pred_check
      _
    $region15: #{controller_forward.1} parent=1 // pred_check_branch
      %40 = sbr.rel (0) target = $region17
    $region16: #{controller_forward.1} parent=1 // pred_region
      %42 = dma.done [#allocation5], 1792
    $region17: #{controller_forward.1} parent=1 // pred_fallthru
      _
    %v43 = vld [vmem:[#allocation2] sm:$0xff]
    %v44 = vld [vmem:[#allocation2 + $0x8] sm:$0xff]
    %v45 = vld [vmem:[#allocation4] sm:$0xff]
    %v46 = vld [vmem:[#allocation4 + $0x8] sm:$0xff]
    %v47 = vld [vmem:[#allocation4 + $0x10] sm:$0xff]
    %v48 = vld [vmem:[#allocation4 + $0x18] sm:$0xff]
    %v49 = vld [vmem:[#allocation4 + $0x20] sm:$0xff]
    %v50 = vld [vmem:[#allocation4 + $0x28] sm:$0xff]
    %v51 = vld [vmem:[#allocation4 + $0x30] sm:$0xff]
    %v52 = vld [vmem:[#allocation4 + $0x38] sm:$0xff]
    %v53 = vld [vmem:[#allocation4 + $0x40] sm:$0x1]
    %v54 = vld [vmem:[#allocation4 + $0x48] sm:$0xff]
    %v55 = vld [vmem:[#allocation4 + $0x50] sm:$0xff]
    %v56 = vld [vmem:[#allocation4 + $0x58] sm:$0xff]
    %v57 = vld [vmem:[#allocation4 + $0x60] sm:$0xff]
    %v58 = vld [vmem:[#allocation4 + $0x68] sm:$0x1]
    %vm59 = vcmask 261120
    %v61 = vsel %vm59, %v43, 0
    %v64 = vsel %vm59, %v44, 0
    %66 = vmatpush.msra.mxu0 0.0
    %67 = vmatpush.msra.mxu0 0.0
    %68 = vmatpush.msra.mxu0 0.0
    %69 = vmatpush.msra.mxu0 0.0
    %70 = vmatpush.msra.mxu0 0.0
    %71 = vmatpush.msra.mxu0 0.0
    %72 = vmatpush.msra.mxu0 0.0
    %73 = vmatpush.msra.mxu0 0.0
    %74 = vmatpush.msra.mxu0 0.0
    %75 = vmatpush.msra.mxu0 0.0
    %76 = vmatpush.msra.mxu0 0.0
    %77 = vmatpush.msra.mxu0 0.0
    %78 = vmatpush.msra.mxu0 %v57
    %79 = vmatpush.msra.mxu0 %v56
    %80 = vmatpush.msra.mxu0 %v55
    %81 = vmatpush.msra.mxu0 %v54
    %82 = vmatmul.f32.gmra.mxu0 %v61
    %v83 = vpop.f32.mrf.mxu0
    %v84 = vadd.f32 0.0, %v83
    %85 = vmatmul.f32.gmra.mxu0 %v64
    %v86 = vpop.f32.mrf.mxu0
    %v87 = vadd.f32 0.0, %v86
    %88 = vdwg.mxu0
    %v89 = vperm.slane %v58, 0
    %v90 = vsel %vm59, %v89, 0.0
    %v91 = vperm.slane %v53, 0
    %vm92 = vcmask 523264
    %v94 = vsel %vm92, %v90, 0
    %96 = vmatpush.msra.mxu0 0.0
    %97 = vmatpush.msra.mxu0 0.0
    %98 = vmatpush.msra.mxu0 0.0
    %99 = vmatpush.msra.mxu0 0.0
    %100 = vmatpush.msra.mxu0 0.0
    %101 = vmatpush.msra.mxu0 0.0
    %102 = vmatpush.msra.mxu0 0.0
    %103 = vmatpush.msra.mxu0 0.0
    %104 = vmatpush.msra.mxu0 %v52
    %105 = vmatpush.msra.mxu0 %v51
    %106 = vmatpush.msra.mxu0 %v50
    %107 = vmatpush.msra.mxu0 %v49
    %108 = vmatpush.msra.mxu0 %v48
    %109 = vmatpush.msra.mxu0 %v47
    %110 = vmatpush.msra.mxu0 %v46
    %111 = vmatpush.msra.mxu0 %v45
    %112 = vmatmul.f32.gmra.mxu0 %v94
    %v113 = vpop.f32.mrf.mxu0
    %v114 = vadd.f32 %v91, %v113
    %115 = vdwg.mxu0
    %v116 = vxor.u32 %v114, 2147483648
    %v117 = vmul.f32 %v116, 1.442695
    %v118 = vpow.pop %v117
    %v119 = vadd.f32 %v118, 1.0
    %v120 = vrcp.pop %v119
    %v121 = vmul.f32 %v119, %v120
    %v122 = vsub.f32 1.0, %v121
    %v123 = vmul.f32 %v120, %v122
    %v124 = vadd.f32 %v120, %v123
    %vm125 = vweird.f32 %v119
    %vm126 = vweird.f32 %v120
    %vm127 = vmor %vm125, %vm126
    %v128 = vsel %vm127, %v120, %v124
    %v129 = vand.u32 2147483647, %v119
    %vm130 = vcmp.eq.f32.partialorder %v129, 8.507059e+37
    %v131 = vand.u32 %v119, 2147483648
    %v132 = vor.u32 1.1754944e-38, %v131
    %v133 = vsel %vm130, %v132, %v128
    %v134 = vmul.f32 1.0, %v133
    %v135 = vtanh.pop %v114
    %v136 = vmul.f32 %v134, 0.0
    %138 = vrot.lane.b32.xlu0 %v135, 64
    %v139 = vpop.permute.xlu0 %138
    %v141 = vmul.f32 %v134, %v139
    %143 = vrot.lane.b32.xlu0 %v141, 32
    %v144 = vpop.permute.xlu0 %143
    %v146 = vadd.f32 %v136, %v144
    %v147 = vtanh.pop %v146
    %149 = vrot.lane.b32.xlu0 %v147, 64
    %v150 = vpop.permute.xlu0 %149
    %v152 = vmul.f32 %v134, %v150
    %v154 = vrot.slane %v152, 1
    %v155 = vperm.slane %v152, 0
    %v156 = vperm.slane %v154, 0
    %157 = vrot.lane.b32.xlu0 %v155, 32
    %v158 = vpop.permute.xlu0 %157
    %159 = vrot.lane.b32.xlu0 %v156, 32
    %v160 = vpop.permute.xlu0 %159
    %v163 = vmul.f32 %v84, %v158
    %v164 = vmul.f32 %v87, %v160
    %v165 = vsel %vm59, %v163, 0.0
    %166 = vadd.xlane.f32.xlu0 %v165
    %v167 = vpop.xlane.xlu0 %166
    %v168 = vsel %vm59, %v164, 0.0
    %169 = vadd.xlane.f32.xlu0 %v168
    %v170 = vpop.xlane.xlu0 %169
    %v173 = vlaneseq
    %v174 = vand.u32 %v173, 127
    %v175 = vperm.slane %v167, %v174
    %v176 = vperm.slane %v170, %v174
    %vm177 = vcmask 1041409
    %v178 = vsel %vm177, %v176, %v175
    %vm180 = vcmask 58368
    %v181 = vsel %vm180, %v178, -inf
    %182 = vmax.xlane.f32.xlu0 %v181
    %v183 = vpop.xlane.xlu0 %182
    %v185 = vperm.slane %v183, 0
    %v186 = vperm.slane %v183, 1
    %v189 = vsub.f32 %v167, %v185
    %v190 = vsub.f32 %v170, %v186
    %v191 = vmul.f32 %v189, 1.442695
    %v192 = vpow.pop %v191
    %v193 = vmul.f32 %v190, 1.442695
    %v194 = vpow.pop %v193
    %197 = vset.pattern.permute.xlu0 0
    %198 = vperm.xlu0 %197, %v192
    %v199 = vpop.permute.xlu0 %198
    %200 = vset.pattern.permute.xlu0 0
    %201 = vperm.xlu0 %200, %v194
    %v202 = vpop.permute.xlu0 %201
    %v203 = vperm.slane %v199, %v174
    %v204 = vperm.slane %v202, %v174
    %v205 = vsel %vm177, %v204, %v203
    %v207 = vsel %vm180, %v205, 0.0
    %208 = vadd.xlane.f32.xlu0 %v207
    %v209 = vpop.xlane.xlu0 %208
    %v210 = vrcp.pop %v209
    %v211 = vmul.f32 %v209, %v210
    %v212 = vsub.f32 1.0, %v211
    %v213 = vmul.f32 %v210, %v212
    %v214 = vadd.f32 %v210, %v213
    %vm215 = vweird.f32 %v209
    %vm216 = vweird.f32 %v210
    %vm217 = vmor %vm215, %vm216
    %v218 = vsel %vm217, %v210, %v214
    %v219 = vand.u32 2147483647, %v209
    %vm220 = vcmp.eq.f32.partialorder %v219, 8.507059e+37
    %v221 = vand.u32 %v209, 2147483648
    %v222 = vor.u32 1.1754944e-38, %v221
    %v223 = vsel %vm220, %v222, %v218
    %v225 = vperm.slane %v223, 0
    %v226 = vperm.slane %v223, 1
    %v229 = vmul.f32 %v192, %v225
    %v230 = vmul.f32 %v194, %v226
    %232 = vset.pattern.permute.xlu0 0
    %233 = vperm.xlu0 %232, %v229
    %v234 = vpop.permute.xlu0 %233
    %237 = vset.pattern.permute.xlu0 0
    %238 = vperm.xlu0 %237, %v230
    %v239 = vpop.permute.xlu0 %238
    %v241 = vmul.f32 %v234, %v84
    %v242 = vmul.f32 %v239, %v87
    %vm243 = vcmask 523520
    %v244 = vsel %vm243, %v241, 0.0
    %v245 = vrot.slane %v244, 4
    %v246 = vadd.f32 %v244, %v245
    %v247 = vrot.slane %v246, 2
    %v248 = vadd.f32 %v246, %v247
    %v249 = vrot.slane %v248, 1
    %v250 = vadd.f32 %v248, %v249
    %v251 = vsel %vm243, %v242, 0.0
    %v252 = vrot.slane %v251, 4
    %v253 = vadd.f32 %v251, %v252
    %v254 = vrot.slane %v253, 2
    %v255 = vadd.f32 %v253, %v254
    %v256 = vrot.slane %v255, 1
    %v257 = vadd.f32 %v255, %v256
    %v260 = vsel %vm177, %v257, %v250
    %261 = vrot.lane.b32.xlu0 %v260, 96
    %v262 = vpop.permute.xlu0 %261
    %v264 = vadd.s32 %v174, 4294967264
    %v265 = vperm.slane %v234, %v264
    %v266 = vperm.slane %v239, %v264
    %v267 = vsel %vm177, %v266, %v265
    %v269 = vsel %vm59, %v262, %v267
    %vm270 = vcmask 326656
    %v271 = vsel %vm270, %v269, 0.0
    %272 = vst [vmem:[%s2] sm:$0x3] %v271
    %273 = vrot.lane.b32.xlu0 %v152, 64
    %v274 = vpop.permute.xlu0 %273
    %v276 = vsel %vm59, %v262, %v274
    %v278 = vsel %vm92, %v276, 0
    %280 = vmatpush.msra.mxu0 0.0
    %281 = vmatpush.msra.mxu0 0.0
    %282 = vmatpush.msra.mxu0 0.0
    %283 = vmatpush.msra.mxu0 0.0
    %284 = vmatpush.msra.mxu0 0.0
    %285 = vmatpush.msra.mxu0 0.0
    %286 = vmatpush.msra.mxu0 0.0
    %287 = vmatpush.msra.mxu0 0.0
    %288 = vmatpush.msra.mxu0 %v52
    %289 = vmatpush.msra.mxu0 %v51
    %290 = vmatpush.msra.mxu0 %v50
    %291 = vmatpush.msra.mxu0 %v49
    %292 = vmatpush.msra.mxu0 %v48
    %293 = vmatpush.msra.mxu0 %v47
    %294 = vmatpush.msra.mxu0 %v46
    %295 = vmatpush.msra.mxu0 %v45
    %296 = vmatmul.f32.gmra.mxu0 %v278
    %v297 = vpop.f32.mrf.mxu0
    %v298 = vadd.f32 %v91, %v297
    %299 = vdwg.mxu0
    %v300 = vxor.u32 %v298, 2147483648
    %v301 = vmul.f32 %v300, 1.442695
    %v302 = vpow.pop %v301
    %v303 = vadd.f32 %v302, 1.0
    %v304 = vrcp.pop %v303
    %v305 = vmul.f32 %v303, %v304
    %v306 = vsub.f32 1.0, %v305
    %v307 = vmul.f32 %v304, %v306
    %v308 = vadd.f32 %v304, %v307
    %vm309 = vweird.f32 %v303
    %vm310 = vweird.f32 %v304
    %vm311 = vmor %vm309, %vm310
    %v312 = vsel %vm311, %v304, %v308
    %v313 = vand.u32 2147483647, %v303
    %vm314 = vcmp.eq.f32.partialorder %v313, 8.507059e+37
    %v315 = vand.u32 %v303, 2147483648
    %v316 = vor.u32 1.1754944e-38, %v315
    %v317 = vsel %vm314, %v316, %v312
    %v318 = vmul.f32 1.0, %v317
    %v319 = vtanh.pop %v298
    %v320 = vmul.f32 %v318, %v146
    %322 = vrot.lane.b32.xlu0 %v319, 64
    %v323 = vpop.permute.xlu0 %322
    %v325 = vmul.f32 %v318, %v323
    %327 = vrot.lane.b32.xlu0 %v325, 32
    %v328 = vpop.permute.xlu0 %327
    %v330 = vadd.f32 %v320, %v328
    %v331 = vtanh.pop %v330
    %333 = vrot.lane.b32.xlu0 %v331, 64
    %v334 = vpop.permute.xlu0 %333
    %v336 = vmul.f32 %v318, %v334
    %v338 = vrot.slane %v336, 1
    %v339 = vperm.slane %v336, 0
    %v340 = vperm.slane %v338, 0
    %341 = vrot.lane.b32.xlu0 %v339, 32
    %v342 = vpop.permute.xlu0 %341
    %343 = vrot.lane.b32.xlu0 %v340, 32
    %v344 = vpop.permute.xlu0 %343
    %v347 = vmul.f32 %v84, %v342
    %v348 = vmul.f32 %v87, %v344
    %v349 = vsel %vm59, %v347, 0.0
    %350 = vadd.xlane.f32.xlu0 %v349
    %v351 = vpop.xlane.xlu0 %350
    %v352 = vsel %vm59, %v348, 0.0
    %353 = vadd.xlane.f32.xlu0 %v352
    %v354 = vpop.xlane.xlu0 %353
    %v357 = vperm.slane %v351, %v174
    %v358 = vperm.slane %v354, %v174
    %v359 = vsel %vm177, %v358, %v357
    %v361 = vsel %vm180, %v359, -inf
    %362 = vmax.xlane.f32.xlu0 %v361
    %v363 = vpop.xlane.xlu0 %362
    %v365 = vperm.slane %v363, 0
    %v366 = vperm.slane %v363, 1
    %v369 = vsub.f32 %v351, %v365
    %v370 = vsub.f32 %v354, %v366
    %v371 = vmul.f32 %v369, 1.442695
    %v372 = vpow.pop %v371
    %v373 = vmul.f32 %v370, 1.442695
    %v374 = vpow.pop %v373
    %377 = vset.pattern.permute.xlu0 0
    %378 = vperm.xlu0 %377, %v372
    %v379 = vpop.permute.xlu0 %378
    %380 = vset.pattern.permute.xlu0 0
    %381 = vperm.xlu0 %380, %v374
    %v382 = vpop.permute.xlu0 %381
    %v383 = vperm.slane %v379, %v174
    %v384 = vperm.slane %v382, %v174
    %v385 = vsel %vm177, %v384, %v383
    %v387 = vsel %vm180, %v385, 0.0
    %388 = vadd.xlane.f32.xlu0 %v387
    %v389 = vpop.xlane.xlu0 %388
    %v390 = vrcp.pop %v389
    %v391 = vmul.f32 %v389, %v390
    %v392 = vsub.f32 1.0, %v391
    %v393 = vmul.f32 %v390, %v392
    %v394 = vadd.f32 %v390, %v393
    %vm395 = vweird.f32 %v389
    %vm396 = vweird.f32 %v390
    %vm397 = vmor %vm395, %vm396
    %v398 = vsel %vm397, %v390, %v394
    %v399 = vand.u32 2147483647, %v389
    %vm400 = vcmp.eq.f32.partialorder %v399, 8.507059e+37
    %v401 = vand.u32 %v389, 2147483648
    %v402 = vor.u32 1.1754944e-38, %v401
    %v403 = vsel %vm400, %v402, %v398
    %v405 = vperm.slane %v403, 0
    %v406 = vperm.slane %v403, 1
    %v409 = vmul.f32 %v372, %v405
    %v410 = vmul.f32 %v374, %v406
    %412 = vset.pattern.permute.xlu0 0
    %413 = vperm.xlu0 %412, %v409
    %v414 = vpop.permute.xlu0 %413
    %417 = vset.pattern.permute.xlu0 0
    %418 = vperm.xlu0 %417, %v410
    %v419 = vpop.permute.xlu0 %418
    %v421 = vmul.f32 %v414, %v84
    %v422 = vmul.f32 %v419, %v87
    %v423 = vsel %vm243, %v421, 0.0
    %v424 = vrot.slane %v423, 4
    %v425 = vadd.f32 %v423, %v424
    %v426 = vrot.slane %v425, 2
    %v427 = vadd.f32 %v425, %v426
    %v428 = vrot.slane %v427, 1
    %v429 = vadd.f32 %v427, %v428
    %v430 = vsel %vm243, %v422, 0.0
    %v431 = vrot.slane %v430, 4
    %v432 = vadd.f32 %v430, %v431
    %v433 = vrot.slane %v432, 2
    %v434 = vadd.f32 %v432, %v433
    %v435 = vrot.slane %v434, 1
    %v436 = vadd.f32 %v434, %v435
    %v439 = vsel %vm177, %v436, %v429
    %440 = vrot.lane.b32.xlu0 %v439, 96
    %v441 = vpop.permute.xlu0 %440
    %v443 = vperm.slane %v414, %v264
    %v444 = vperm.slane %v419, %v264
    %v445 = vsel %vm177, %v444, %v443
    %v447 = vsel %vm59, %v441, %v445
    %v448 = vsel %vm270, %v447, 0.0
    %s449 = scalar_lea.vmem %s2, 2
    %450 = vst [vmem:[%s449] sm:$0x3] %v448
    %451 = vrot.lane.b32.xlu0 %v336, 64
    %v452 = vpop.permute.xlu0 %451
    %v454 = vsel %vm59, %v441, %v452
    %v456 = vsel %vm92, %v454, 0
    %458 = vmatpush.msra.mxu0 0.0
    %459 = vmatpush.msra.mxu0 0.0
    %460 = vmatpush.msra.mxu0 0.0
    %461 = vmatpush.msra.mxu0 0.0
    %462 = vmatpush.msra.mxu0 0.0
    %463 = vmatpush.msra.mxu0 0.0
    %464 = vmatpush.msra.mxu0 0.0
    %465 = vmatpush.msra.mxu0 0.0
    %466 = vmatpush.msra.mxu0 %v52
    %467 = vmatpush.msra.mxu0 %v51
    %468 = vmatpush.msra.mxu0 %v50
    %469 = vmatpush.msra.mxu0 %v49
    %470 = vmatpush.msra.mxu0 %v48
    %471 = vmatpush.msra.mxu0 %v47
    %472 = vmatpush.msra.mxu0 %v46
    %473 = vmatpush.msra.mxu0 %v45
    %474 = vmatmul.f32.gmra.mxu0 %v456
    %v475 = vpop.f32.mrf.mxu0
    %v476 = vadd.f32 %v91, %v475
    %477 = vdwg.mxu0
    %v478 = vxor.u32 %v476, 2147483648
    %v479 = vmul.f32 %v478, 1.442695
    %v480 = vpow.pop %v479
    %v481 = vadd.f32 %v480, 1.0
    %v482 = vrcp.pop %v481
    %v483 = vmul.f32 %v481, %v482
    %v484 = vsub.f32 1.0, %v483
    %v485 = vmul.f32 %v482, %v484
    %v486 = vadd.f32 %v482, %v485
    %vm487 = vweird.f32 %v481
    %vm488 = vweird.f32 %v482
    %vm489 = vmor %vm487, %vm488
    %v490 = vsel %vm489, %v482, %v486
    %v491 = vand.u32 2147483647, %v481
    %vm492 = vcmp.eq.f32.partialorder %v491, 8.507059e+37
    %v493 = vand.u32 %v481, 2147483648
    %v494 = vor.u32 1.1754944e-38, %v493
    %v495 = vsel %vm492, %v494, %v490
    %v496 = vmul.f32 1.0, %v495
    %v497 = vtanh.pop %v476
    %v498 = vmul.f32 %v496, %v330
    %500 = vrot.lane.b32.xlu0 %v497, 64
    %v501 = vpop.permute.xlu0 %500
    %v503 = vmul.f32 %v496, %v501
    %505 = vrot.lane.b32.xlu0 %v503, 32
    %v506 = vpop.permute.xlu0 %505
    %v508 = vadd.f32 %v498, %v506
    %v509 = vtanh.pop %v508
    %511 = vrot.lane.b32.xlu0 %v509, 64
    %v512 = vpop.permute.xlu0 %511
    %v514 = vmul.f32 %v496, %v512
    %v516 = vrot.slane %v514, 1
    %v517 = vperm.slane %v514, 0
    %v518 = vperm.slane %v516, 0
    %519 = vrot.lane.b32.xlu0 %v517, 32
    %v520 = vpop.permute.xlu0 %519
    %521 = vrot.lane.b32.xlu0 %v518, 32
    %v522 = vpop.permute.xlu0 %521
    %v525 = vmul.f32 %v84, %v520
    %v526 = vmul.f32 %v87, %v522
    %v527 = vsel %vm59, %v525, 0.0
    %528 = vadd.xlane.f32.xlu0 %v527
    %v529 = vpop.xlane.xlu0 %528
    %v530 = vsel %vm59, %v526, 0.0
    %531 = vadd.xlane.f32.xlu0 %v530
    %v532 = vpop.xlane.xlu0 %531
    %v535 = vperm.slane %v529, %v174
    %v536 = vperm.slane %v532, %v174
    %v537 = vsel %vm177, %v536, %v535
    %v539 = vsel %vm180, %v537, -inf
    %540 = vmax.xlane.f32.xlu0 %v539
    %v541 = vpop.xlane.xlu0 %540
    %v543 = vperm.slane %v541, 0
    %v544 = vperm.slane %v541, 1
    %v547 = vsub.f32 %v529, %v543
    %v548 = vsub.f32 %v532, %v544
    %v549 = vmul.f32 %v547, 1.442695
    %v550 = vpow.pop %v549
    %v551 = vmul.f32 %v548, 1.442695
    %v552 = vpow.pop %v551
    %555 = vset.pattern.permute.xlu0 0
    %556 = vperm.xlu0 %555, %v550
    %v557 = vpop.permute.xlu0 %556
    %558 = vset.pattern.permute.xlu0 0
    %559 = vperm.xlu0 %558, %v552
    %v560 = vpop.permute.xlu0 %559
    %v561 = vperm.slane %v557, %v174
    %v562 = vperm.slane %v560, %v174
    %v563 = vsel %vm177, %v562, %v561
    %v565 = vsel %vm180, %v563, 0.0
    %566 = vadd.xlane.f32.xlu0 %v565
    %v567 = vpop.xlane.xlu0 %566
    %v568 = vrcp.pop %v567
    %v569 = vmul.f32 %v567, %v568
    %v570 = vsub.f32 1.0, %v569
    %v571 = vmul.f32 %v568, %v570
    %v572 = vadd.f32 %v568, %v571
    %vm573 = vweird.f32 %v567
    %vm574 = vweird.f32 %v568
    %vm575 = vmor %vm573, %vm574
    %v576 = vsel %vm575, %v568, %v572
    %v577 = vand.u32 2147483647, %v567
    %vm578 = vcmp.eq.f32.partialorder %v577, 8.507059e+37
    %v579 = vand.u32 %v567, 2147483648
    %v580 = vor.u32 1.1754944e-38, %v579
    %v581 = vsel %vm578, %v580, %v576
    %v583 = vperm.slane %v581, 0
    %v584 = vperm.slane %v581, 1
    %v587 = vmul.f32 %v550, %v583
    %v588 = vmul.f32 %v552, %v584
    %590 = vset.pattern.permute.xlu0 0
    %591 = vperm.xlu0 %590, %v587
    %v592 = vpop.permute.xlu0 %591
    %595 = vset.pattern.permute.xlu0 0
    %596 = vperm.xlu0 %595, %v588
    %v597 = vpop.permute.xlu0 %596
    %v599 = vmul.f32 %v592, %v84
    %v600 = vmul.f32 %v597, %v87
    %v601 = vsel %vm243, %v599, 0.0
    %v602 = vrot.slane %v601, 4
    %v603 = vadd.f32 %v601, %v602
    %v604 = vrot.slane %v603, 2
    %v605 = vadd.f32 %v603, %v604
    %v606 = vrot.slane %v605, 1
    %v607 = vadd.f32 %v605, %v606
    %v608 = vsel %vm243, %v600, 0.0
    %v609 = vrot.slane %v608, 4
    %v610 = vadd.f32 %v608, %v609
    %v611 = vrot.slane %v610, 2
    %v612 = vadd.f32 %v610, %v611
    %v613 = vrot.slane %v612, 1
    %v614 = vadd.f32 %v612, %v613
    %v617 = vsel %vm177, %v614, %v607
    %618 = vrot.lane.b32.xlu0 %v617, 96
    %v619 = vpop.permute.xlu0 %618
    %v621 = vperm.slane %v592, %v264
    %v622 = vperm.slane %v597, %v264
    %v623 = vsel %vm177, %v622, %v621
    %v625 = vsel %vm59, %v619, %v623
    %v626 = vsel %vm270, %v625, 0.0
    %s627 = scalar_lea.vmem %s2, 4
    %628 = vst [vmem:[%s627] sm:$0x3] %v626
    %629 = vrot.lane.b32.xlu0 %v514, 64
    %v630 = vpop.permute.xlu0 %629
    %v632 = vsel %vm59, %v619, %v630
    %v634 = vsel %vm92, %v632, 0
    %636 = vmatpush.msra.mxu0 0.0
    %637 = vmatpush.msra.mxu0 0.0
    %638 = vmatpush.msra.mxu0 0.0
    %639 = vmatpush.msra.mxu0 0.0
    %640 = vmatpush.msra.mxu0 0.0
    %641 = vmatpush.msra.mxu0 0.0
    %642 = vmatpush.msra.mxu0 0.0
    %643 = vmatpush.msra.mxu0 0.0
    %644 = vmatpush.msra.mxu0 %v52
    %645 = vmatpush.msra.mxu0 %v51
    %646 = vmatpush.msra.mxu0 %v50
    %647 = vmatpush.msra.mxu0 %v49
    %648 = vmatpush.msra.mxu0 %v48
    %649 = vmatpush.msra.mxu0 %v47
    %650 = vmatpush.msra.mxu0 %v46
    %651 = vmatpush.msra.mxu0 %v45
    %652 = vmatmul.f32.gmra.mxu0 %v634
    %v653 = vpop.f32.mrf.mxu0
    %v654 = vadd.f32 %v91, %v653
    %655 = vdwg.mxu0
    %v656 = vxor.u32 %v654, 2147483648
    %v657 = vmul.f32 %v656, 1.442695
    %v658 = vpow.pop %v657
    %v659 = vadd.f32 %v658, 1.0
    %v660 = vrcp.pop %v659
    %v661 = vmul.f32 %v659, %v660
    %v662 = vsub.f32 1.0, %v661
    %v663 = vmul.f32 %v660, %v662
    %v664 = vadd.f32 %v660, %v663
    %vm665 = vweird.f32 %v659
    %vm666 = vweird.f32 %v660
    %vm667 = vmor %vm665, %vm666
    %v668 = vsel %vm667, %v660, %v664
    %v669 = vand.u32 2147483647, %v659
    %vm670 = vcmp.eq.f32.partialorder %v669, 8.507059e+37
    %v671 = vand.u32 %v659, 2147483648
    %v672 = vor.u32 1.1754944e-38, %v671
    %v673 = vsel %vm670, %v672, %v668
    %v674 = vmul.f32 1.0, %v673
    %v675 = vtanh.pop %v654
    %v676 = vmul.f32 %v674, %v508
    %678 = vrot.lane.b32.xlu0 %v675, 64
    %v679 = vpop.permute.xlu0 %678
    %v681 = vmul.f32 %v674, %v679
    %683 = vrot.lane.b32.xlu0 %v681, 32
    %v684 = vpop.permute.xlu0 %683
    %v686 = vadd.f32 %v676, %v684
    %v687 = vtanh.pop %v686
    %689 = vrot.lane.b32.xlu0 %v687, 64
    %v690 = vpop.permute.xlu0 %689
    %v692 = vmul.f32 %v674, %v690
    %v694 = vrot.slane %v692, 1
    %v695 = vperm.slane %v692, 0
    %v696 = vperm.slane %v694, 0
    %697 = vrot.lane.b32.xlu0 %v695, 32
    %v698 = vpop.permute.xlu0 %697
    %699 = vrot.lane.b32.xlu0 %v696, 32
    %v700 = vpop.permute.xlu0 %699
    %v703 = vmul.f32 %v84, %v698
    %v704 = vmul.f32 %v87, %v700
    %v705 = vsel %vm59, %v703, 0.0
    %706 = vadd.xlane.f32.xlu0 %v705
    %v707 = vpop.xlane.xlu0 %706
    %v708 = vsel %vm59, %v704, 0.0
    %709 = vadd.xlane.f32.xlu0 %v708
    %v710 = vpop.xlane.xlu0 %709
    %v713 = vperm.slane %v707, %v174
    %v714 = vperm.slane %v710, %v174
    %v715 = vsel %vm177, %v714, %v713
    %v717 = vsel %vm180, %v715, -inf
    %718 = vmax.xlane.f32.xlu0 %v717
    %v719 = vpop.xlane.xlu0 %718
    %v721 = vperm.slane %v719, 0
    %v722 = vperm.slane %v719, 1
    %v725 = vsub.f32 %v707, %v721
    %v726 = vsub.f32 %v710, %v722
    %v727 = vmul.f32 %v725, 1.442695
    %v728 = vpow.pop %v727
    %v729 = vmul.f32 %v726, 1.442695
    %v730 = vpow.pop %v729
    %733 = vset.pattern.permute.xlu0 0
    %734 = vperm.xlu0 %733, %v728
    %v735 = vpop.permute.xlu0 %734
    %736 = vset.pattern.permute.xlu0 0
    %737 = vperm.xlu0 %736, %v730
    %v738 = vpop.permute.xlu0 %737
    %v739 = vperm.slane %v735, %v174
    %v740 = vperm.slane %v738, %v174
    %v741 = vsel %vm177, %v740, %v739
    %v743 = vsel %vm180, %v741, 0.0
    %744 = vadd.xlane.f32.xlu0 %v743
    %v745 = vpop.xlane.xlu0 %744
    %v746 = vrcp.pop %v745
    %v747 = vmul.f32 %v745, %v746
    %v748 = vsub.f32 1.0, %v747
    %v749 = vmul.f32 %v746, %v748
    %v750 = vadd.f32 %v746, %v749
    %vm751 = vweird.f32 %v745
    %vm752 = vweird.f32 %v746
    %vm753 = vmor %vm751, %vm752
    %v754 = vsel %vm753, %v746, %v750
    %v755 = vand.u32 2147483647, %v745
    %vm756 = vcmp.eq.f32.partialorder %v755, 8.507059e+37
    %v757 = vand.u32 %v745, 2147483648
    %v758 = vor.u32 1.1754944e-38, %v757
    %v759 = vsel %vm756, %v758, %v754
    %v761 = vperm.slane %v759, 0
    %v762 = vperm.slane %v759, 1
    %v765 = vmul.f32 %v728, %v761
    %v766 = vmul.f32 %v730, %v762
    %768 = vset.pattern.permute.xlu0 0
    %769 = vperm.xlu0 %768, %v765
    %v770 = vpop.permute.xlu0 %769
    %773 = vset.pattern.permute.xlu0 0
    %774 = vperm.xlu0 %773, %v766
    %v775 = vpop.permute.xlu0 %774
    %v777 = vmul.f32 %v770, %v84
    %v778 = vmul.f32 %v775, %v87
    %v779 = vsel %vm243, %v777, 0.0
    %v780 = vrot.slane %v779, 4
    %v781 = vadd.f32 %v779, %v780
    %v782 = vrot.slane %v781, 2
    %v783 = vadd.f32 %v781, %v782
    %v784 = vrot.slane %v783, 1
    %v785 = vadd.f32 %v783, %v784
    %v786 = vsel %vm243, %v778, 0.0
    %v787 = vrot.slane %v786, 4
    %v788 = vadd.f32 %v786, %v787
    %v789 = vrot.slane %v788, 2
    %v790 = vadd.f32 %v788, %v789
    %v791 = vrot.slane %v790, 1
    %v792 = vadd.f32 %v790, %v791
    %v795 = vsel %vm177, %v792, %v785
    %796 = vrot.lane.b32.xlu0 %v795, 96
    %v797 = vpop.permute.xlu0 %796
    %v799 = vperm.slane %v770, %v264
    %v800 = vperm.slane %v775, %v264
    %v801 = vsel %vm177, %v800, %v799
    %v803 = vsel %vm59, %v797, %v801
    %v804 = vsel %vm270, %v803, 0.0
    %s805 = scalar_lea.vmem %s2, 6
    %806 = vst [vmem:[%s805] sm:$0x3] %v804
    %807 = vrot.lane.b32.xlu0 %v692, 64
    %v808 = vpop.permute.xlu0 %807
    %v810 = vsel %vm59, %v797, %v808
    %v812 = vsel %vm92, %v810, 0
    %814 = vmatpush.msra.mxu0 0.0
    %815 = vmatpush.msra.mxu0 0.0
    %816 = vmatpush.msra.mxu0 0.0
    %817 = vmatpush.msra.mxu0 0.0
    %818 = vmatpush.msra.mxu0 0.0
    %819 = vmatpush.msra.mxu0 0.0
    %820 = vmatpush.msra.mxu0 0.0
    %821 = vmatpush.msra.mxu0 0.0
    %822 = vmatpush.msra.mxu0 %v52
    %823 = vmatpush.msra.mxu0 %v51
    %824 = vmatpush.msra.mxu0 %v50
    %825 = vmatpush.msra.mxu0 %v49
    %826 = vmatpush.msra.mxu0 %v48
    %827 = vmatpush.msra.mxu0 %v47
    %828 = vmatpush.msra.mxu0 %v46
    %829 = vmatpush.msra.mxu0 %v45
    %830 = vmatmul.f32.gmra.mxu0 %v812
    %v831 = vpop.f32.mrf.mxu0
    %v832 = vadd.f32 %v91, %v831
    %833 = vdwg.mxu0
    %v834 = vxor.u32 %v832, 2147483648
    %v835 = vmul.f32 %v834, 1.442695
    %v836 = vpow.pop %v835
    %v837 = vadd.f32 %v836, 1.0
    %v838 = vrcp.pop %v837
    %v839 = vmul.f32 %v837, %v838
    %v840 = vsub.f32 1.0, %v839
    %v841 = vmul.f32 %v838, %v840
    %v842 = vadd.f32 %v838, %v841
    %vm843 = vweird.f32 %v837
    %vm844 = vweird.f32 %v838
    %vm845 = vmor %vm843, %vm844
    %v846 = vsel %vm845, %v838, %v842
    %v847 = vand.u32 2147483647, %v837
    %vm848 = vcmp.eq.f32.partialorder %v847, 8.507059e+37
    %v849 = vand.u32 %v837, 2147483648
    %v850 = vor.u32 1.1754944e-38, %v849
    %v851 = vsel %vm848, %v850, %v846
    %v852 = vmul.f32 1.0, %v851
    %v853 = vtanh.pop %v832
    %v854 = vmul.f32 %v852, %v686
    %856 = vrot.lane.b32.xlu0 %v853, 64
    %v857 = vpop.permute.xlu0 %856
    %v859 = vmul.f32 %v852, %v857
    %861 = vrot.lane.b32.xlu0 %v859, 32
    %v862 = vpop.permute.xlu0 %861
    %v864 = vadd.f32 %v854, %v862
    %v865 = vtanh.pop %v864
    %867 = vrot.lane.b32.xlu0 %v865, 64
    %v868 = vpop.permute.xlu0 %867
    %v870 = vmul.f32 %v852, %v868
    %v872 = vrot.slane %v870, 1
    %v873 = vperm.slane %v870, 0
    %v874 = vperm.slane %v872, 0
    %875 = vrot.lane.b32.xlu0 %v873, 32
    %v876 = vpop.permute.xlu0 %875
    %877 = vrot.lane.b32.xlu0 %v874, 32
    %v878 = vpop.permute.xlu0 %877
    %v881 = vmul.f32 %v84, %v876
    %v882 = vmul.f32 %v87, %v878
    %v883 = vsel %vm59, %v881, 0.0
    %884 = vadd.xlane.f32.xlu0 %v883
    %v885 = vpop.xlane.xlu0 %884
    %v886 = vsel %vm59, %v882, 0.0
    %887 = vadd.xlane.f32.xlu0 %v886
    %v888 = vpop.xlane.xlu0 %887
    %v891 = vperm.slane %v885, %v174
    %v892 = vperm.slane %v888, %v174
    %v893 = vsel %vm177, %v892, %v891
    %v895 = vsel %vm180, %v893, -inf
    %896 = vmax.xlane.f32.xlu0 %v895
    %v897 = vpop.xlane.xlu0 %896
    %v899 = vperm.slane %v897, 0
    %v900 = vperm.slane %v897, 1
    %v903 = vsub.f32 %v885, %v899
    %v904 = vsub.f32 %v888, %v900
    %v905 = vmul.f32 %v903, 1.442695
    %v906 = vpow.pop %v905
    %v907 = vmul.f32 %v904, 1.442695
    %v908 = vpow.pop %v907
    %911 = vset.pattern.permute.xlu0 0
    %912 = vperm.xlu0 %911, %v906
    %v913 = vpop.permute.xlu0 %912
    %914 = vset.pattern.permute.xlu0 0
    %915 = vperm.xlu0 %914, %v908
    %v916 = vpop.permute.xlu0 %915
    %v917 = vperm.slane %v913, %v174
    %v918 = vperm.slane %v916, %v174
    %v919 = vsel %vm177, %v918, %v917
    %v921 = vsel %vm180, %v919, 0.0
    %922 = vadd.xlane.f32.xlu0 %v921
    %v923 = vpop.xlane.xlu0 %922
    %v924 = vrcp.pop %v923
    %v925 = vmul.f32 %v923, %v924
    %v926 = vsub.f32 1.0, %v925
    %v927 = vmul.f32 %v924, %v926
    %v928 = vadd.f32 %v924, %v927
    %vm929 = vweird.f32 %v923
    %vm930 = vweird.f32 %v924
    %vm931 = vmor %vm929, %vm930
    %v932 = vsel %vm931, %v924, %v928
    %v933 = vand.u32 2147483647, %v923
    %vm934 = vcmp.eq.f32.partialorder %v933, 8.507059e+37
    %v935 = vand.u32 %v923, 2147483648
    %v936 = vor.u32 1.1754944e-38, %v935
    %v937 = vsel %vm934, %v936, %v932
    %v939 = vperm.slane %v937, 0
    %v940 = vperm.slane %v937, 1
    %v943 = vmul.f32 %v906, %v939
    %v944 = vmul.f32 %v908, %v940
    %946 = vset.pattern.permute.xlu0 0
    %947 = vperm.xlu0 %946, %v943
    %v948 = vpop.permute.xlu0 %947
    %951 = vset.pattern.permute.xlu0 0
    %952 = vperm.xlu0 %951, %v944
    %v953 = vpop.permute.xlu0 %952
    %v955 = vmul.f32 %v948, %v84
    %v956 = vmul.f32 %v953, %v87
    %v957 = vsel %vm243, %v955, 0.0
    %v958 = vrot.slane %v957, 4
    %v959 = vadd.f32 %v957, %v958
    %v960 = vrot.slane %v959, 2
    %v961 = vadd.f32 %v959, %v960
    %v962 = vrot.slane %v961, 1
    %v963 = vadd.f32 %v961, %v962
    %v964 = vsel %vm243, %v956, 0.0
    %v965 = vrot.slane %v964, 4
    %v966 = vadd.f32 %v964, %v965
    %v967 = vrot.slane %v966, 2
    %v968 = vadd.f32 %v966, %v967
    %v969 = vrot.slane %v968, 1
    %v970 = vadd.f32 %v968, %v969
    %v973 = vsel %vm177, %v970, %v963
    %974 = vrot.lane.b32.xlu0 %v973, 96
    %v975 = vpop.permute.xlu0 %974
    %v977 = vperm.slane %v948, %v264
    %v978 = vperm.slane %v953, %v264
    %v979 = vsel %vm177, %v978, %v977
    %v981 = vsel %vm59, %v975, %v979
    %v982 = vsel %vm270, %v981, 0.0
    %s983 = scalar_lea.vmem %s2, 8
    %984 = vst [vmem:[%s983] sm:$0x3] %v982
    %985 = vrot.lane.b32.xlu0 %v870, 64
    %v986 = vpop.permute.xlu0 %985
    %v988 = vsel %vm59, %v975, %v986
    %v990 = vsel %vm92, %v988, 0
    %992 = vmatpush.msra.mxu0 0.0
    %993 = vmatpush.msra.mxu0 0.0
    %994 = vmatpush.msra.mxu0 0.0
    %995 = vmatpush.msra.mxu0 0.0
    %996 = vmatpush.msra.mxu0 0.0
    %997 = vmatpush.msra.mxu0 0.0
    %998 = vmatpush.msra.mxu0 0.0
    %999 = vmatpush.msra.mxu0 0.0
    %1000 = vmatpush.msra.mxu0 %v52
    %1001 = vmatpush.msra.mxu0 %v51
    %1002 = vmatpush.msra.mxu0 %v50
    %1003 = vmatpush.msra.mxu0 %v49
    %1004 = vmatpush.msra.mxu0 %v48
    %1005 = vmatpush.msra.mxu0 %v47
    %1006 = vmatpush.msra.mxu0 %v46
    %1007 = vmatpush.msra.mxu0 %v45
    %1008 = vmatmul.f32.gmra.mxu0 %v990
    %v1009 = vpop.f32.mrf.mxu0
    %v1010 = vadd.f32 %v91, %v1009
    %1011 = vdwg.mxu0
    %v1012 = vxor.u32 %v1010, 2147483648
    %v1013 = vmul.f32 %v1012, 1.442695
    %v1014 = vpow.pop %v1013
    %v1015 = vadd.f32 %v1014, 1.0
    %v1016 = vrcp.pop %v1015
    %v1017 = vmul.f32 %v1015, %v1016
    %v1018 = vsub.f32 1.0, %v1017
    %v1019 = vmul.f32 %v1016, %v1018
    %v1020 = vadd.f32 %v1016, %v1019
    %vm1021 = vweird.f32 %v1015
    %vm1022 = vweird.f32 %v1016
    %vm1023 = vmor %vm1021, %vm1022
    %v1024 = vsel %vm1023, %v1016, %v1020
    %v1025 = vand.u32 2147483647, %v1015
    %vm1026 = vcmp.eq.f32.partialorder %v1025, 8.507059e+37
    %v1027 = vand.u32 %v1015, 2147483648
    %v1028 = vor.u32 1.1754944e-38, %v1027
    %v1029 = vsel %vm1026, %v1028, %v1024
    %v1030 = vmul.f32 1.0, %v1029
    %v1031 = vtanh.pop %v1010
    %v1032 = vmul.f32 %v1030, %v864
    %1034 = vrot.lane.b32.xlu0 %v1031, 64
    %v1035 = vpop.permute.xlu0 %1034
    %v1037 = vmul.f32 %v1030, %v1035
    %1039 = vrot.lane.b32.xlu0 %v1037, 32
    %v1040 = vpop.permute.xlu0 %1039
    %v1042 = vadd.f32 %v1032, %v1040
    %v1043 = vtanh.pop %v1042
    %1045 = vrot.lane.b32.xlu0 %v1043, 64
    %v1046 = vpop.permute.xlu0 %1045
    %v1048 = vmul.f32 %v1030, %v1046
    %v1050 = vrot.slane %v1048, 1
    %v1051 = vperm.slane %v1048, 0
    %v1052 = vperm.slane %v1050, 0
    %1053 = vrot.lane.b32.xlu0 %v1051, 32
    %v1054 = vpop.permute.xlu0 %1053
    %1055 = vrot.lane.b32.xlu0 %v1052, 32
    %v1056 = vpop.permute.xlu0 %1055
    %v1059 = vmul.f32 %v84, %v1054
    %v1060 = vmul.f32 %v87, %v1056
    %v1061 = vsel %vm59, %v1059, 0.0
    %1062 = vadd.xlane.f32.xlu0 %v1061
    %v1063 = vpop.xlane.xlu0 %1062
    %v1064 = vsel %vm59, %v1060, 0.0
    %1065 = vadd.xlane.f32.xlu0 %v1064
    %v1066 = vpop.xlane.xlu0 %1065
    %v1069 = vperm.slane %v1063, %v174
    %v1070 = vperm.slane %v1066, %v174
    %v1071 = vsel %vm177, %v1070, %v1069
    %v1073 = vsel %vm180, %v1071, -inf
    %1074 = vmax.xlane.f32.xlu0 %v1073
    %v1075 = vpop.xlane.xlu0 %1074
    %v1077 = vperm.slane %v1075, 0
    %v1078 = vperm.slane %v1075, 1
    %v1081 = vsub.f32 %v1063, %v1077
    %v1082 = vsub.f32 %v1066, %v1078
    %v1083 = vmul.f32 %v1081, 1.442695
    %v1084 = vpow.pop %v1083
    %v1085 = vmul.f32 %v1082, 1.442695
    %v1086 = vpow.pop %v1085
    %1089 = vset.pattern.permute.xlu0 0
    %1090 = vperm.xlu0 %1089, %v1084
    %v1091 = vpop.permute.xlu0 %1090
    %1092 = vset.pattern.permute.xlu0 0
    %1093 = vperm.xlu0 %1092, %v1086
    %v1094 = vpop.permute.xlu0 %1093
    %v1095 = vperm.slane %v1091, %v174
    %v1096 = vperm.slane %v1094, %v174
    %v1097 = vsel %vm177, %v1096, %v1095
    %v1099 = vsel %vm180, %v1097, 0.0
    %1100 = vadd.xlane.f32.xlu0 %v1099
    %v1101 = vpop.xlane.xlu0 %1100
    %v1102 = vrcp.pop %v1101
    %v1103 = vmul.f32 %v1101, %v1102
    %v1104 = vsub.f32 1.0, %v1103
    %v1105 = vmul.f32 %v1102, %v1104
    %v1106 = vadd.f32 %v1102, %v1105
    %vm1107 = vweird.f32 %v1101
    %vm1108 = vweird.f32 %v1102
    %vm1109 = vmor %vm1107, %vm1108
    %v1110 = vsel %vm1109, %v1102, %v1106
    %v1111 = vand.u32 2147483647, %v1101
    %vm1112 = vcmp.eq.f32.partialorder %v1111, 8.507059e+37
    %v1113 = vand.u32 %v1101, 2147483648
    %v1114 = vor.u32 1.1754944e-38, %v1113
    %v1115 = vsel %vm1112, %v1114, %v1110
    %v1117 = vperm.slane %v1115, 0
    %v1118 = vperm.slane %v1115, 1
    %v1121 = vmul.f32 %v1084, %v1117
    %v1122 = vmul.f32 %v1086, %v1118
    %1124 = vset.pattern.permute.xlu0 0
    %1125 = vperm.xlu0 %1124, %v1121
    %v1126 = vpop.permute.xlu0 %1125
    %1129 = vset.pattern.permute.xlu0 0
    %1130 = vperm.xlu0 %1129, %v1122
    %v1131 = vpop.permute.xlu0 %1130
    %v1133 = vmul.f32 %v1126, %v84
    %v1134 = vmul.f32 %v1131, %v87
    %v1135 = vsel %vm243, %v1133, 0.0
    %v1136 = vrot.slane %v1135, 4
    %v1137 = vadd.f32 %v1135, %v1136
    %v1138 = vrot.slane %v1137, 2
    %v1139 = vadd.f32 %v1137, %v1138
    %v1140 = vrot.slane %v1139, 1
    %v1141 = vadd.f32 %v1139, %v1140
    %v1142 = vsel %vm243, %v1134, 0.0
    %v1143 = vrot.slane %v1142, 4
    %v1144 = vadd.f32 %v1142, %v1143
    %v1145 = vrot.slane %v1144, 2
    %v1146 = vadd.f32 %v1144, %v1145
    %v1147 = vrot.slane %v1146, 1
    %v1148 = vadd.f32 %v1146, %v1147
    %v1151 = vsel %vm177, %v1148, %v1141
    %1152 = vrot.lane.b32.xlu0 %v1151, 96
    %v1153 = vpop.permute.xlu0 %1152
    %v1155 = vperm.slane %v1126, %v264
    %v1156 = vperm.slane %v1131, %v264
    %v1157 = vsel %vm177, %v1156, %v1155
    %v1159 = vsel %vm59, %v1153, %v1157
    %v1160 = vsel %vm270, %v1159, 0.0
    %s1161 = scalar_lea.vmem %s2, 10
    %1162 = vst [vmem:[%s1161] sm:$0x3] %v1160
    // Predicated region
    $region18: #{controller_forward.1} parent=1 // pred_check
      _
    $region19: #{controller_forward.1} parent=1 // pred_check_branch
      %1164 = sbr.rel (0) target = $region21
    $region20: #{controller_forward.1} parent=1 // pred_region
      _
    $region21: #{controller_forward.1} parent=1 // pred_fallthru
      _
    // Predicated region
    $region22: #{controller_forward.1} parent=1 // pred_check
      _
    $region23: #{controller_forward.1} parent=1 // pred_check_branch
      %1166 = sbr.rel (0) target = $region25
    $region24: #{controller_forward.1} parent=1 // pred_region
      _
    $region25: #{controller_forward.1} parent=1 // pred_fallthru
      _
    %1167 = vsyncpa [#allocation3], 1
    %1168 = vsyncpa [#allocation5], 1

</llo_original>
